<compile_context>
chip_gen: v7x
topology: tpu7x:2x2x1
jax: 0.10.0
libtpu: 0.0.40
codegen_flags: <defaults>
</compile_context>

<pallas_src>
import jax
import jax.numpy as jnp
from jax import lax
from jax.experimental import pallas as pl
from jax.experimental.pallas import tpu as pltpu


def _round_up(x: int, m: int) -> int:
    return ((x + m - 1) // m) * m


def _vmem_capacity_bytes() -> int:
    """Per-core VMEM capacity; conservative 64 MiB (v7x) fallback."""
    try:
        info = pltpu.get_tpu_info()
        cap = getattr(info, "vmem_capacity_bytes", None)
        if cap:
            return int(cap)
    except Exception:
        pass
    return 64 * 1024 * 1024


# --------------------------------------------------------------------------- kernels
def _cplx_fullk_kernel(xr_ref, xi_ref, wr_ref, wi_ref, br_ref, bi_ref,
                       yr_ref, yi_ref):
    """One (tm, tn) output tile with the full (padded) K dimension in VMEM."""
    xr = xr_ref[...]
    xi = xi_ref[...]
    wr = wr_ref[...]
    wi = wi_ref[...]
    yr_ref[...] = (jnp.dot(xr, wr, preferred_element_type=jnp.float32)
                   - jnp.dot(xi, wi, preferred_element_type=jnp.float32)
                   + br_ref[...])
    yi_ref[...] = (jnp.dot(xr, wi, preferred_element_type=jnp.float32)
                   + jnp.dot(xi, wr, preferred_element_type=jnp.float32)
                   + bi_ref[...])


def _cplx_ktiled_kernel(xr_ref, xi_ref, wr_ref, wi_ref, br_ref, bi_ref,
                        yr_ref, yi_ref):
    """K-tiled fallback: accumulate directly into the resident f32 output tile."""
    k = pl.program_id(2)

    @pl.when(k == 0)
    def _seed_with_bias():
        # Seed the accumulation with the bias -> no acc scratch, no finalize pass.
        yr_ref[...] = jnp.broadcast_to(br_ref[...], yr_ref.shape)
        yi_ref[...] = jnp.broadcast_to(bi_ref[...], yi_ref.shape)

    xr = xr_ref[...]
    xi = xi_ref[...]
    wr = wr_ref[...]
    wi = wi_ref[...]
    yr_ref[...] += (jnp.dot(xr, wr, preferred_element_type=jnp.float32)
                    - jnp.dot(xi, wi, preferred_element_type=jnp.float32))
    yi_ref[...] += (jnp.dot(xr, wi, preferred_element_type=jnp.float32)
                    + jnp.dot(xi, wr, preferred_element_type=jnp.float32))


# --------------------------------------------------------------------------- wrapper
def pack_complex_linear_params(weight, bias, *, use_bf16_operands: bool = True):
    """One-time parameter packing (do at load time, NOT on every forward call).

    Splits real/imag, pads K and N to multiples of 128, and casts the weight
    planes to the MXU operand dtype. The bias stays f32 (added to the f32
    accumulator).
    """
    operand_dtype = jnp.bfloat16 if use_bf16_operands else jnp.float32
    k, n = weight.shape
    kp = _round_up(k, 128)
    np_ = _round_up(n, 128)
    wr = jnp.pad(jnp.real(weight).astype(jnp.float32), ((0, kp - k), (0, np_ - n)))
    wi = jnp.pad(jnp.imag(weight).astype(jnp.float32), ((0, kp - k), (0, np_ - n)))
    br = jnp.pad(jnp.real(bias).astype(jnp.float32), (0, np_ - n))[None, :]
    bi = jnp.pad(jnp.imag(bias).astype(jnp.float32), (0, np_ - n))[None, :]
    return {
        "wr": wr.astype(operand_dtype),
        "wi": wi.astype(operand_dtype),
        "br": br,
        "bi": bi,
        "in_features": k,
        "out_features": n,
        "operand_dtype": operand_dtype,
    }


def complex_linear_packed(x, params):
    """Y = X @ W + b for complex64 X using pre-packed params."""
    wr, wi = params["wr"], params["wi"]
    br, bi = params["br"], params["bi"]
    k = params["in_features"]
    n = params["out_features"]
    operand_dtype = params["operand_dtype"]
    esz = 2 if operand_dtype == jnp.bfloat16 else 4

    kp, np_ = wr.shape
    assert x.shape[-1] == k, (x.shape, k)
    batch_shape = x.shape[:-1]
    m = 1
    for d in batch_shape:
        m *= d
    x2 = x.reshape(m, k)
    # Single pass over X: split real/imag and cast to the operand dtype.
    xr = jnp.real(x2).astype(operand_dtype)
    xi = jnp.imag(x2).astype(operand_dtype)

    # bf16 packs 2 rows per sublane -> align M tiles to 16; f32 -> 8.
    m_align = 16 if esz == 2 else 8

    vmem_cap = _vmem_capacity_bytes()
    budget = int(0.70 * vmem_cap)                       # tile working set (with 2x buffers)
    vmem_limit = min(int(0.90 * vmem_cap), 110 * 1024 * 1024)

    # ---- tile selection ----------------------------------------------------
    tm_max = _round_up(max(m, 1), m_align)
    tm_cands = sorted({min(_round_up(t, m_align), tm_max)
                       for t in (512, 256, 128, 32, m_align)}, reverse=True)
    tn_cands = sorted({t for t in (1024, 512, 256, 128, np_)
                       if t <= np_ and np_ % t == 0}, reverse=True)

    def fullk_bytes(tm, tn):
        # 2x double-buffering for every pipelined ref; outputs are f32.
        return (2 * (2 * tm * kp * esz)        # Xr + Xi tiles
                + 2 * (2 * kp * tn * esz)      # Wr + Wi panels
                + 2 * (2 * tn * 4)             # biases
                + 2 * (2 * tm * tn * 4))       # Yr + Yi tiles

    def ktiled_bytes(tm, tn, tk):
        return (2 * (2 * tm * tk * esz)
                + 2 * (2 * tk * tn * esz)
                + 2 * (2 * tn * 4)
                + 2 * (2 * tm * tn * 4))

    mode = None
    tm = tn = tk = None
    for a, b in sorted(((a, b) for a in tm_cands for b in tn_cands),
                       key=lambda c: (c[0] * c[1], c[1]), reverse=True):
        if fullk_bytes(a, b) <= budget:
            mode, tm, tn, tk = "fullk", a, b, kp
            break
    if mode is None:
        tk_cands = sorted({t for t in (2048, 1024, 512, 256, 128)
                           if t <= kp and kp % t == 0}, reverse=True)
        for tk_, tm_, tn_ in sorted(
                ((a, b, c) for a in tk_cands for b in tm_cands for c in tn_cands),
                key=lambda c: (c[0], c[1] * c[2], c[2]), reverse=True):
            if ktiled_bytes(tm_, tn_, tk_) <= budget:
                mode, tm, tn, tk = "ktiled", tm_, tn_, tk_
                break
        if mode is None:  # pathological fallback: smallest legal tiles
            mode, tm, tn, tk = "ktiled", m_align, 128, 128

    if mode == "fullk":
        # v7x megacore: if the grid would be a single block but there is real
        # M work, split M so both TensorCores get a tile.
        if (_round_up(m, tm) // tm) * (np_ // tn) == 1 and m > 128 and tm >= 2 * m_align:
            tm = _round_up(tm // 2, m_align)

    mp = _round_up(m, tm)
    xr = jnp.pad(xr, ((0, mp - m), (0, kp - k)))
    xi = jnp.pad(xi, ((0, mp - m), (0, kp - k)))

    n_i = mp // tm
    n_j = np_ // tn

    if mode == "fullk":
        # Operand-stationary grid: keep the operand with the larger total HBM
        # footprint resident across the innermost axis (constant block index
        # => Pallas skips its re-DMA), minimizing total HBM reads.
        x_bytes = 2 * mp * kp * esz
        w_bytes = 2 * kp * np_ * esz
        w_stationary = (w_bytes + x_bytes * n_j) <= (x_bytes + w_bytes * n_i)

        if w_stationary:
            grid = (n_j, n_i)                      # i innermost -> W/bias resident
            x_map = lambda j, i: (i, 0)
            w_map = lambda j, i: (0, j)
            b_map = lambda j, i: (0, j)
            o_map = lambda j, i: (i, j)
        else:
            grid = (n_i, n_j)                      # j innermost -> X resident
            x_map = lambda i, j: (i, 0)
            w_map = lambda i, j: (0, j)
            b_map = lambda i, j: (0, j)
            o_map = lambda i, j: (i, j)

        kernel = _cplx_fullk_kernel
        dim_sem = ("parallel", "parallel")
        x_block = (tm, kp)
        w_block = (kp, tn)
    else:
        n_k = kp // tk
        grid = (n_i, n_j, n_k)
        x_map = lambda i, j, kk: (i, kk)
        w_map = lambda i, j, kk: (kk, j)
        b_map = lambda i, j, kk: (0, j)
        o_map = lambda i, j, kk: (i, j)
        kernel = _cplx_ktiled_kernel
        dim_sem = ("parallel", "parallel", "arbitrary")
        x_block = (tm, tk)
        w_block = (tk, tn)

    out_shape = (jax.ShapeDtypeStruct((mp, np_), jnp.float32),
                 jax.ShapeDtypeStruct((mp, np_), jnp.float32))

    yr_p, yi_p = pl.pallas_call(
        kernel,
        out_shape=out_shape,
        grid_spec=pltpu.PrefetchScalarGridSpec(
            num_scalar_prefetch=0,
            grid=grid,
            in_specs=[
                pl.BlockSpec(x_block, x_map),      # Xr
                pl.BlockSpec(x_block, x_map),      # Xi
                pl.BlockSpec(w_block, w_map),      # Wr
                pl.BlockSpec(w_block, w_map),      # Wi
                pl.BlockSpec((1, tn), b_map),      # br
                pl.BlockSpec((1, tn), b_map),      # bi
            ],
            out_specs=[
                pl.BlockSpec((tm, tn), o_map),     # Yr
                pl.BlockSpec((tm, tn), o_map),     # Yi
            ],
        ),
        compiler_params=pltpu.CompilerParams(
            dimension_semantics=dim_sem,
            vmem_limit_bytes=vmem_limit,
        ),
    )(xr, xi, wr, wi, br, bi)

    y = lax.complex(yr_p[:m, :n], yi_p[:m, :n])
    return y.reshape(*batch_shape, n)


def complex_linear(x, weight, bias, *, use_bf16_operands: bool = True):
    """Convenience one-shot wrapper (packs params on every call).

    Prefer pack_complex_linear_params() once at load time + complex_linear_packed()
    per forward call so weight repacking stays off the hot path.
    """
    params = pack_complex_linear_params(weight, bias,
                                        use_bf16_operands=use_bf16_operands)
    return complex_linear_packed(x, params)


if __name__ == "__main__":
    in_features, out_features = 32, 16
    batch_shape = (2, 8)

    key = jax.random.PRNGKey(0)
    kxr, kxi, kwr, kwi, kbr, kbi = jax.random.split(key, 6)

    weight = lax.complex(
        jax.random.normal(kwr, (in_features, out_features), jnp.float32),
        jax.random.normal(kwi, (in_features, out_features), jnp.float32))
    bias = lax.complex(
        jax.random.normal(kbr, (out_features,), jnp.float32),
        jax.random.normal(kbi, (out_features,), jnp.float32))
    x = lax.complex(
        jax.random.normal(kxr, (*batch_shape, in_features), jnp.float32),
        jax.random.normal(kxi, (*batch_shape, in_features), jnp.float32))

    y_ref = jnp.matmul(x, weight) + bias

    # Default fast path: bf16 MXU operands, f32 accumulation, params packed once.
    params = pack_complex_linear_params(weight, bias, use_bf16_operands=True)
    y_fast = jax.block_until_ready(complex_linear_packed(x, params))
    assert y_fast.shape == (*batch_shape, out_features)
    assert y_fast.dtype == jnp.complex64
    assert jnp.allclose(y_fast, y_ref, atol=5e-1, rtol=5e-2), \
        float(jnp.max(jnp.abs(y_fast - y_ref)))

    # Strict path: f32 operands -> matches PyTorch cfloat matmul numerics.
    y_strict = jax.block_until_ready(
        complex_linear(x, weight, bias, use_bf16_operands=False))
    assert y_strict.shape == (*batch_shape, out_features)
    assert y_strict.dtype == jnp.complex64
    assert jnp.allclose(y_strict, y_ref, atol=1e-4, rtol=1e-4), \
        float(jnp.max(jnp.abs(y_strict - y_ref)))

    print("KERNEL_OK")
</pallas_src>

<mosaic_0001>
module attributes {stable_mosaic.version = 11 : i64} {
  func.func @_cplx_fullk_kernel(%arg0: i32, %arg1: i32, %arg2: memref<16x128xbf16, #tpu.memory_space<vmem>>, %arg3: memref<16x128xbf16, #tpu.memory_space<vmem>>, %arg4: memref<128x128xbf16, #tpu.memory_space<vmem>>, %arg5: memref<128x128xbf16, #tpu.memory_space<vmem>>, %arg6: memref<1x128xf32, #tpu.memory_space<vmem>>, %arg7: memref<1x128xf32, #tpu.memory_space<vmem>>, %arg8: memref<16x128xf32, #tpu.memory_space<vmem>>, %arg9: memref<16x128xf32, #tpu.memory_space<vmem>>) attributes {dimension_semantics = [#tpu.dimension_semantics<parallel>, #tpu.dimension_semantics<parallel>], iteration_bounds = array<i64: 1, 1>, scalar_prefetch = 0 : i64, scratch_operands = 0 : i64, tpu.core_type = #tpu.core_type<tc>, window_params = [{transform_indices = @transform_0, window_bounds = array<i64: 16, 128>}, {transform_indices = @transform_1, window_bounds = array<i64: 16, 128>}, {transform_indices = @transform_2, window_bounds = array<i64: 128, 128>}, {transform_indices = @transform_3, window_bounds = array<i64: 128, 128>}, {transform_indices = @transform_4, window_bounds = array<i64: 1, 128>}, {transform_indices = @transform_5, window_bounds = array<i64: 1, 128>}, {transform_indices = @transform_6, window_bounds = array<i64: 16, 128>}, {transform_indices = @transform_7, window_bounds = array<i64: 16, 128>}]} {
    %c0 = arith.constant 0 : index
    %c0_0 = arith.constant 0 : index
    %0 = vector.load %arg2[%c0, %c0_0] : memref<16x128xbf16, #tpu.memory_space<vmem>>, vector<16x128xbf16>
    %c0_1 = arith.constant 0 : index
    %c0_2 = arith.constant 0 : index
    %1 = vector.load %arg3[%c0_1, %c0_2] : memref<16x128xbf16, #tpu.memory_space<vmem>>, vector<16x128xbf16>
    %c0_3 = arith.constant 0 : index
    %c0_4 = arith.constant 0 : index
    %2 = vector.load %arg4[%c0_3, %c0_4] : memref<128x128xbf16, #tpu.memory_space<vmem>>, vector<128x128xbf16>
    %c0_5 = arith.constant 0 : index
    %c0_6 = arith.constant 0 : index
    %3 = vector.load %arg5[%c0_5, %c0_6] : memref<128x128xbf16, #tpu.memory_space<vmem>>, vector<128x128xbf16>
    %cst = arith.constant dense<0.000000e+00> : vector<16x128xf32>
    %4 = tpu.matmul %0, %2, %cst {dimension_numbers = #tpu.dot_dimension_numbers<[1], [0], [0], [1], [0, 0, 1, 1], [], []>} : vector<16x128xbf16>, vector<128x128xbf16>, vector<16x128xf32> -> vector<16x128xf32>
    %cst_7 = arith.constant dense<0.000000e+00> : vector<16x128xf32>
    %5 = tpu.matmul %1, %3, %cst_7 {dimension_numbers = #tpu.dot_dimension_numbers<[1], [0], [0], [1], [0, 0, 1, 1], [], []>} : vector<16x128xbf16>, vector<128x128xbf16>, vector<16x128xf32> -> vector<16x128xf32>
    %6 = arith.subf %4, %5 : vector<16x128xf32>
    %c0_8 = arith.constant 0 : index
    %c0_9 = arith.constant 0 : index
    %7 = vector.load %arg6[%c0_8, %c0_9] : memref<1x128xf32, #tpu.memory_space<vmem>>, vector<1x128xf32>
    %8 = vector.broadcast %7 : vector<1x128xf32> to vector<16x128xf32>
    %9 = arith.addf %6, %8 : vector<16x128xf32>
    %c0_10 = arith.constant 0 : index
    %c0_11 = arith.constant 0 : index
    %10 = vector.load %arg8[%c0_10, %c0_11] : memref<16x128xf32, #tpu.memory_space<vmem>>, vector<16x128xf32>
    tpu.vector_store %arg8[%c0_10, %c0_11], %9 {strides = array<i32>} : memref<16x128xf32, #tpu.memory_space<vmem>>, vector<16x128xf32>,
    %cst_12 = arith.constant dense<0.000000e+00> : vector<16x128xf32>
    %11 = tpu.matmul %0, %3, %cst_12 {dimension_numbers = #tpu.dot_dimension_numbers<[1], [0], [0], [1], [0, 0, 1, 1], [], []>} : vector<16x128xbf16>, vector<128x128xbf16>, vector<16x128xf32> -> vector<16x128xf32>
    %cst_13 = arith.constant dense<0.000000e+00> : vector<16x128xf32>
    %12 = tpu.matmul %1, %2, %cst_13 {dimension_numbers = #tpu.dot_dimension_numbers<[1], [0], [0], [1], [0, 0, 1, 1], [], []>} : vector<16x128xbf16>, vector<128x128xbf16>, vector<16x128xf32> -> vector<16x128xf32>
    %13 = arith.addf %11, %12 : vector<16x128xf32>
    %c0_14 = arith.constant 0 : index
    %c0_15 = arith.constant 0 : index
    %14 = vector.load %arg7[%c0_14, %c0_15] : memref<1x128xf32, #tpu.memory_space<vmem>>, vector<1x128xf32>
    %15 = vector.broadcast %14 : vector<1x128xf32> to vector<16x128xf32>
    %16 = arith.addf %13, %15 : vector<16x128xf32>
    %c0_16 = arith.constant 0 : index
    %c0_17 = arith.constant 0 : index
    %17 = vector.load %arg9[%c0_16, %c0_17] : memref<16x128xf32, #tpu.memory_space<vmem>>, vector<16x128xf32>
    tpu.vector_store %arg9[%c0_16, %c0_17], %16 {strides = array<i32>} : memref<16x128xf32, #tpu.memory_space<vmem>>, vector<16x128xf32>,
    return
  }
  func.func @transform_0(%arg0: i32, %arg1: i32) -> (i32, i32) {
    %c0_i32 = arith.constant 0 : i32
    %c0_i32_0 = arith.constant 0 : i32
    return %arg1, %c0_i32 : i32, i32
  }
  func.func @transform_1(%arg0: i32, %arg1: i32) -> (i32, i32) {
    %c0_i32 = arith.constant 0 : i32
    %c0_i32_0 = arith.constant 0 : i32
    return %arg1, %c0_i32 : i32, i32
  }
  func.func @transform_2(%arg0: i32, %arg1: i32) -> (i32, i32) {
    %c0_i32 = arith.constant 0 : i32
    %c0_i32_0 = arith.constant 0 : i32
    return %c0_i32, %arg0 : i32, i32
  }
  func.func @transform_3(%arg0: i32, %arg1: i32) -> (i32, i32) {
    %c0_i32 = arith.constant 0 : i32
    %c0_i32_0 = arith.constant 0 : i32
    return %c0_i32, %arg0 : i32, i32
  }
  func.func @transform_4(%arg0: i32, %arg1: i32) -> (i32, i32) {
    %c0_i32 = arith.constant 0 : i32
    %c0_i32_0 = arith.constant 0 : i32
    return %c0_i32, %arg0 : i32, i32
  }
  func.func @transform_5(%arg0: i32, %arg1: i32) -> (i32, i32) {
    %c0_i32 = arith.constant 0 : i32
    %c0_i32_0 = arith.constant 0 : i32
    return %c0_i32, %arg0 : i32, i32
  }
  func.func @transform_6(%arg0: i32, %arg1: i32) -> (i32, i32) {
    %c0_i32 = arith.constant 0 : i32
    return %arg1, %arg0 : i32, i32
  }
  func.func @transform_7(%arg0: i32, %arg1: i32) -> (i32, i32) {
    %c0_i32 = arith.constant 0 : i32
    return %arg1, %arg0 : i32, i32
  }
}

</mosaic_0001>

<llo_original>
// kernel: tpu_custom_call.1
$region0: #{tpu_custom_call.1}
  #allocation0 [shape = 'u32[]', space=smem, size = 0x4, offset = 0x4, fixed_abs, tag = 'smem constant byte address 0x4 - core index']
  #allocation1 [shape = 'u32[144,128]{1,0:T(1,128)}', space=vmem, size = 0x12000, scoped, tag = 'internal scratch']
  %s0 = inlined_call_operand.hbm [shape: bf16[16,128], index: 0, kind: input, shape index: {}]
  %s1 = inlined_call_operand.hbm [shape: bf16[16,128], index: 1, kind: input, shape index: {}]
  %s2 = inlined_call_operand.hbm [shape: bf16[128,128], index: 2, kind: input, shape index: {}]
  %s3 = inlined_call_operand.hbm [shape: bf16[128,128], index: 3, kind: input, shape index: {}]
  %s4 = inlined_call_operand.vmem [shape: f32[1,128], index: 4, kind: input, shape index: {}]
  %s5 = inlined_call_operand.vmem [shape: f32[1,128], index: 5, kind: input, shape index: {}]
  %s6 = inlined_call_operand.hbm [shape: f32[16,128], index: 6, kind: output, shape index: {0}]
  %s7 = inlined_call_operand.hbm [shape: f32[16,128], index: 7, kind: output, shape index: {1}]
  %8 = xla_tuple %s6, %s7
  %s9 = sld [smem:[#allocation0]]
  $region58: #{tpu_custom_call.1} parent=0
    _
  %s11 = ssub.s32 1, %s9
  %s12 = scalar_select 0, %s11, %s9
  $region1: #{tpu_custom_call.1} parent=0
    #allocation2 [shape = 'u8[4096]{0}', space=vmem, size = 0x1000, scoped, tag = 'input window, operand 0, single buffered']
    #allocation3 [shape = 's32[1]{0}', space=sflag, size = 0x4, scoped, tag = 'scoped memory for tpu_custom_call.1']
    #allocation4 [shape = 's32[1]{0}', space=sflag, size = 0x4, scoped, tag = 'scoped memory for tpu_custom_call.1']
    #allocation5 [shape = 'u8[4096]{0}', space=vmem, size = 0x1000, scoped, tag = 'input window, operand 1, single buffered']
    #allocation6 [shape = 's32[1]{0}', space=sflag, size = 0x4, scoped, tag = 'scoped memory for tpu_custom_call.1']
    #allocation7 [shape = 'u8[32768]{0}', space=vmem, size = 0x8000, scoped, tag = 'input window, operand 2, single buffered']
    #allocation8 [shape = 'u8[32768]{0}', space=vmem, size = 0x8000, scoped, tag = 'input window, operand 3, single buffered']
    #allocation9 [shape = 's32[1]{0}', space=sflag, size = 0x4, scoped, tag = 'scoped memory for tpu_custom_call.1']
    #allocation10 [shape = 'u8[8192]{0}', space=vmem, size = 0x2000, scoped, tag = 'output window, operand 0, single buffered']
    #allocation11 [shape = 'u8[8192]{0}', space=vmem, size = 0x2000, scoped, tag = 'output window, operand 1, single buffered']
    #allocation12 [shape = 's32[1]{0}', space=sflag, size = 0x4, scoped, tag = 'scoped memory for tpu_custom_call.1']
    %13 = vsyncpa [#allocation3], 0
    %14 = vsyncpa [#allocation6], 0
    %15 = vsyncpa [#allocation9], 0
    %16 = vsyncpa [#allocation4], 0
    %17 = vsyncpa [#allocation12], 0
    // Predicated region
    $region2: #{tpu_custom_call.1} parent=1 // pred_check
      _
    $region3: #{tpu_custom_call.1} parent=1 // pred_check_branch
      %19 = sbr.rel (0) target = $region5
    $region4: #{tpu_custom_call.1} parent=1 // pred_region
      %s21 = ssub.s32 128, 128
      %22 = vsyncadd [#allocation3], %s21
      %s23 = sshll.u32 [#allocation2], 4
      %s24 = int_to_ptr.vmem [resolvable:$true] %s23
      %29 = dma.hbm_to_vmem [thread:$0]  %s0, 128, %s24, [#allocation3], 64, 64, 4
    $region5: #{tpu_custom_call.1} parent=1 // pred_fallthru
      _
    // Predicated region
    $region6: #{tpu_custom_call.1} parent=1 // pred_check
      _
    $region7: #{tpu_custom_call.1} parent=1 // pred_check_branch
      %31 = sbr.rel (0) target = $region9
    $region8: #{tpu_custom_call.1} parent=1 // pred_region
      %s33 = ssub.s32 128, 128
      %34 = vsyncadd [#allocation6], %s33
      %s35 = sshll.u32 [#allocation5], 4
      %s36 = int_to_ptr.vmem [resolvable:$true] %s35
      %41 = dma.hbm_to_vmem [thread:$0]  %s1, 128, %s36, [#allocation6], 64, 64, 4
    $region9: #{tpu_custom_call.1} parent=1 // pred_fallthru
      _
    // Predicated region
    $region10: #{tpu_custom_call.1} parent=1 // pred_check
      _
    $region11: #{tpu_custom_call.1} parent=1 // pred_check_branch
      %43 = sbr.rel (0) target = $region13
    $region12: #{tpu_custom_call.1} parent=1 // pred_region
      %s45 = ssub.s32 1024, 1024
      %46 = vsyncadd [#allocation6], %s45
      %s47 = sshll.u32 [#allocation7], 4
      %s48 = int_to_ptr.vmem [resolvable:$true] %s47
      %53 = dma.hbm_to_vmem [thread:$0]  %s2, 1024, %s48, [#allocation6], 64, 64, 4
    $region13: #{tpu_custom_call.1} parent=1 // pred_fallthru
      _
    // Predicated region
    $region14: #{tpu_custom_call.1} parent=1 // pred_check
      _
    $region15: #{tpu_custom_call.1} parent=1 // pred_check_branch
      %55 = sbr.rel (0) target = $region17
    $region16: #{tpu_custom_call.1} parent=1 // pred_region
      %s57 = ssub.s32 1024, 1024
      %58 = vsyncadd [#allocation9], %s57
      %s59 = sshll.u32 [#allocation8], 4
      %s60 = int_to_ptr.vmem [resolvable:$true] %s59
      %65 = dma.hbm_to_vmem [thread:$0]  %s3, 1024, %s60, [#allocation9], 64, 64, 4
    $region17: #{tpu_custom_call.1} parent=1 // pred_fallthru
      _
    // Predicated region
    $region18: #{tpu_custom_call.1} parent=1 // pred_check
      _
    $region19: #{tpu_custom_call.1} parent=1 // pred_check_branch
      %67 = sbr.rel (0) target = $region21
    $region20: #{tpu_custom_call.1} parent=1 // pred_region
      _
    $region21: #{tpu_custom_call.1} parent=1 // pred_fallthru
      _
    // Predicated region
    $region22: #{tpu_custom_call.1} parent=1 // pred_check
      _
    $region23: #{tpu_custom_call.1} parent=1 // pred_check_branch
      %69 = sbr.rel (0) target = $region25
    $region24: #{tpu_custom_call.1} parent=1 // pred_region
      _
    $region25: #{tpu_custom_call.1} parent=1 // pred_fallthru
      _
    // Predicated region
    $region26: #{tpu_custom_call.1} parent=1 // pred_check
      _
    $region27: #{tpu_custom_call.1} parent=1 // pred_check_branch
      %71 = sbr.rel (0) target = $region29
    $region28: #{tpu_custom_call.1} parent=1 // pred_region
      %72 = dma.done [#allocation3], 128
    $region29: #{tpu_custom_call.1} parent=1 // pred_fallthru
      _
    // Predicated region
    $region30: #{tpu_custom_call.1} parent=1 // pred_check
      _
    $region31: #{tpu_custom_call.1} parent=1 // pred_check_branch
      %74 = sbr.rel (0) target = $region33
    $region32: #{tpu_custom_call.1} parent=1 // pred_region
      %75 = dma.done [#allocation6], 128
    $region33: #{tpu_custom_call.1} parent=1 // pred_fallthru
      _
    // Predicated region
    $region34: #{tpu_custom_call.1} parent=1 // pred_check
      _
    $region35: #{tpu_custom_call.1} parent=1 // pred_check_branch
      %77 = sbr.rel (0) target = $region37
    $region36: #{tpu_custom_call.1} parent=1 // pred_region
      %78 = dma.done [#allocation6], 1024
    $region37: #{tpu_custom_call.1} parent=1 // pred_fallthru
      _
    // Predicated region
    $region38: #{tpu_custom_call.1} parent=1 // pred_check
      _
    $region39: #{tpu_custom_call.1} parent=1 // pred_check_branch
      %80 = sbr.rel (0) target = $region41
    $region40: #{tpu_custom_call.1} parent=1 // pred_region
      %81 = dma.done [#allocation9], 1024
    $region41: #{tpu_custom_call.1} parent=1 // pred_fallthru
      _
    %v83 = vld [vmem:[#allocation2] sm:$0xf]
    %v84 = vld [vmem:[#allocation2 + $0x4] sm:$0xf]
    %v85 = vld [vmem:[#allocation5] sm:$0xf]
    %v86 = vld [vmem:[#allocation5 + $0x4] sm:$0xf]
    %v87 = vld [vmem:[#allocation7] sm:$0xf]
    %v88 = vld [vmem:[#allocation7 + $0x4] sm:$0xf]
    %v89 = vld [vmem:[#allocation7 + $0x8] sm:$0xf]
    %v90 = vld [vmem:[#allocation7 + $0xc] sm:$0xf]
    %v91 = vld [vmem:[#allocation7 + $0x10] sm:$0xf]
    %v92 = vld [vmem:[#allocation7 + $0x14] sm:$0xf]
    %v93 = vld [vmem:[#allocation7 + $0x18] sm:$0xf]
    %v94 = vld [vmem:[#allocation7 + $0x1c] sm:$0xf]
    %v95 = vld [vmem:[#allocation7 + $0x20] sm:$0xf]
    %v96 = vld [vmem:[#allocation7 + $0x24] sm:$0xf]
    %v97 = vld [vmem:[#allocation7 + $0x28] sm:$0xf]
    %v98 = vld [vmem:[#allocation7 + $0x2c] sm:$0xf]
    %v99 = vld [vmem:[#allocation7 + $0x30] sm:$0xf]
    %v100 = vld [vmem:[#allocation7 + $0x34] sm:$0xf]
    %v101 = vld [vmem:[#allocation7 + $0x38] sm:$0xf]
    %v102 = vld [vmem:[#allocation7 + $0x3c] sm:$0xf]
    %v103 = vld [vmem:[#allocation8] sm:$0xf]
    %v104 = vld [vmem:[#allocation8 + $0x4] sm:$0xf]
    %v105 = vld [vmem:[#allocation8 + $0x8] sm:$0xf]
    %v106 = vld [vmem:[#allocation8 + $0xc] sm:$0xf]
    %v107 = vld [vmem:[#allocation8 + $0x10] sm:$0xf]
    %v108 = vld [vmem:[#allocation8 + $0x14] sm:$0xf]
    %v109 = vld [vmem:[#allocation8 + $0x18] sm:$0xf]
    %v110 = vld [vmem:[#allocation8 + $0x1c] sm:$0xf]
    %v111 = vld [vmem:[#allocation8 + $0x20] sm:$0xf]
    %v112 = vld [vmem:[#allocation8 + $0x24] sm:$0xf]
    %v113 = vld [vmem:[#allocation8 + $0x28] sm:$0xf]
    %v114 = vld [vmem:[#allocation8 + $0x2c] sm:$0xf]
    %v115 = vld [vmem:[#allocation8 + $0x30] sm:$0xf]
    %v116 = vld [vmem:[#allocation8 + $0x34] sm:$0xf]
    %v117 = vld [vmem:[#allocation8 + $0x38] sm:$0xf]
    %v118 = vld [vmem:[#allocation8 + $0x3c] sm:$0xf]
    %v121 = vunpack.c.l.b16 %v83
    %v122 = vunpack.c.l.b16 %v84
    %v123 = vpack.c.b16 %v122, %v121
    %v141 = vunpack.c.l.b16 %v87
    %v142 = vunpack.c.l.b16 %v88
    %v143 = vunpack.c.l.b16 %v89
    %v144 = vunpack.c.l.b16 %v90
    %v145 = vunpack.c.l.b16 %v91
    %v146 = vunpack.c.l.b16 %v92
    %v147 = vunpack.c.l.b16 %v93
    %v148 = vunpack.c.l.b16 %v94
    %v149 = vunpack.c.l.b16 %v95
    %v150 = vunpack.c.l.b16 %v96
    %v151 = vunpack.c.l.b16 %v97
    %v152 = vunpack.c.l.b16 %v98
    %v153 = vunpack.c.l.b16 %v99
    %v154 = vunpack.c.l.b16 %v100
    %v155 = vunpack.c.l.b16 %v101
    %v156 = vunpack.c.l.b16 %v102
    %v157 = vpack.c.b16 %v142, %v141
    %v158 = vpack.c.b16 %v144, %v143
    %v159 = vpack.c.b16 %v146, %v145
    %v160 = vpack.c.b16 %v148, %v147
    %v161 = vpack.c.b16 %v150, %v149
    %v162 = vpack.c.b16 %v152, %v151
    %v163 = vpack.c.b16 %v154, %v153
    %v164 = vpack.c.b16 %v156, %v155
    %173 = vmatprep.subr.bf16.mxu0 0
    %174 = vmatpush1.bf16.msra.mxu0 %v157
    %175 = vmatprep.subr.bf16.mxu0 0
    %176 = vmatpush1.bf16.msra.mxu0 %v158
    %177 = vmatprep.subr.bf16.mxu0 0
    %178 = vmatpush1.bf16.msra.mxu0 %v159
    %179 = vmatprep.subr.bf16.mxu0 0
    %180 = vmatpush1.bf16.msra.mxu0 %v160
    %181 = vmatprep.subr.bf16.mxu0 0
    %182 = vmatpush1.bf16.msra.mxu0 %v161
    %183 = vmatprep.subr.bf16.mxu0 0
    %184 = vmatpush1.bf16.msra.mxu0 %v162
    %185 = vmatprep.subr.bf16.mxu0 0
    %186 = vmatpush1.bf16.msra.mxu0 %v163
    %187 = vmatprep.subr.bf16.mxu0 0
    %188 = vmatpush1.bf16.msra.mxu0 %v164
    %189 = vmatprep.subr.bf16.mxu0 0
    %190 = vmatpush1.bf16.msra.mxu0 0
    %191 = vmatprep.subr.bf16.mxu0 0
    %192 = vmatpush1.bf16.msra.mxu0 0
    %193 = vmatprep.subr.bf16.mxu0 0
    %194 = vmatpush1.bf16.msra.mxu0 0
    %195 = vmatprep.subr.bf16.mxu0 0
    %196 = vmatpush1.bf16.msra.mxu0 0
    %197 = vmatprep.subr.bf16.mxu0 0
    %198 = vmatpush1.bf16.msra.mxu0 0
    %199 = vmatprep.subr.bf16.mxu0 0
    %200 = vmatpush1.bf16.msra.mxu0 0
    %201 = vmatprep.subr.bf16.mxu0 0
    %202 = vmatpush1.bf16.msra.mxu0 0
    %203 = vmatprep.subr.bf16.mxu0 0
    %204 = vmatpush1.bf16.msra.mxu0 0
    %205 = vmatprep.mubr.bf16.mxu0 0
    %206 = vmatmul.mubr.bf16.gmra.mrb[0].mxu0 %v123
    %v207 = vpop.f32.mrb[0].mxu0
    %v208 = vadd.f32 0.0, %v207
    %v209 = vpop.f32.mrb[0].mxu0
    %v210 = vpop.f32.mrb[0].mxu0
    %v211 = vadd.f32 0.0, %v210
    %v212 = vpop.f32.mrb[0].mxu0
    %213 = vdwg.mxu0
    %v216 = vunpack.c.l.b16 %v85
    %v217 = vunpack.c.l.b16 %v86
    %v218 = vpack.c.b16 %v217, %v216
    %v236 = vunpack.c.l.b16 %v103
    %v237 = vunpack.c.l.b16 %v104
    %v238 = vunpack.c.l.b16 %v105
    %v239 = vunpack.c.l.b16 %v106
    %v240 = vunpack.c.l.b16 %v107
    %v241 = vunpack.c.l.b16 %v108
    %v242 = vunpack.c.l.b16 %v109
    %v243 = vunpack.c.l.b16 %v110
    %v244 = vunpack.c.l.b16 %v111
    %v245 = vunpack.c.l.b16 %v112
    %v246 = vunpack.c.l.b16 %v113
    %v247 = vunpack.c.l.b16 %v114
    %v248 = vunpack.c.l.b16 %v115
    %v249 = vunpack.c.l.b16 %v116
    %v250 = vunpack.c.l.b16 %v117
    %v251 = vunpack.c.l.b16 %v118
    %v252 = vpack.c.b16 %v237, %v236
    %v253 = vpack.c.b16 %v239, %v238
    %v254 = vpack.c.b16 %v241, %v240
    %v255 = vpack.c.b16 %v243, %v242
    %v256 = vpack.c.b16 %v245, %v244
    %v257 = vpack.c.b16 %v247, %v246
    %v258 = vpack.c.b16 %v249, %v248
    %v259 = vpack.c.b16 %v251, %v250
    %268 = vmatprep.subr.bf16.mxu0 0
    %269 = vmatpush1.bf16.msra.mxu0 %v252
    %270 = vmatprep.subr.bf16.mxu0 0
    %271 = vmatpush1.bf16.msra.mxu0 %v253
    %272 = vmatprep.subr.bf16.mxu0 0
    %273 = vmatpush1.bf16.msra.mxu0 %v254
    %274 = vmatprep.subr.bf16.mxu0 0
    %275 = vmatpush1.bf16.msra.mxu0 %v255
    %276 = vmatprep.subr.bf16.mxu0 0
    %277 = vmatpush1.bf16.msra.mxu0 %v256
    %278 = vmatprep.subr.bf16.mxu0 0
    %279 = vmatpush1.bf16.msra.mxu0 %v257
    %280 = vmatprep.subr.bf16.mxu0 0
    %281 = vmatpush1.bf16.msra.mxu0 %v258
    %282 = vmatprep.subr.bf16.mxu0 0
    %283 = vmatpush1.bf16.msra.mxu0 %v259
    %284 = vmatprep.subr.bf16.mxu0 0
    %285 = vmatpush1.bf16.msra.mxu0 0
    %286 = vmatprep.subr.bf16.mxu0 0
    %287 = vmatpush1.bf16.msra.mxu0 0
    %288 = vmatprep.subr.bf16.mxu0 0
    %289 = vmatpush1.bf16.msra.mxu0 0
    %290 = vmatprep.subr.bf16.mxu0 0
    %291 = vmatpush1.bf16.msra.mxu0 0
    %292 = vmatprep.subr.bf16.mxu0 0
    %293 = vmatpush1.bf16.msra.mxu0 0
    %294 = vmatprep.subr.bf16.mxu0 0
    %295 = vmatpush1.bf16.msra.mxu0 0
    %296 = vmatprep.subr.bf16.mxu0 0
    %297 = vmatpush1.bf16.msra.mxu0 0
    %298 = vmatprep.subr.bf16.mxu0 0
    %299 = vmatpush1.bf16.msra.mxu0 0
    %300 = vmatprep.mubr.bf16.mxu0 0
    %301 = vmatmul.mubr.bf16.gmra.mrb[0].mxu0 %v218
    %v302 = vpop.f32.mrb[0].mxu0
    %v303 = vadd.f32 0.0, %v302
    %v304 = vpop.f32.mrb[0].mxu0
    %v305 = vpop.f32.mrb[0].mxu0
    %v306 = vadd.f32 0.0, %v305
    %v307 = vpop.f32.mrb[0].mxu0
    %308 = vdwg.mxu0
    %v309 = vsub.f32 %v208, %v303
    %v310 = vsub.f32 %v211, %v306
    %v311 = vld [vmem:[%s4] sm:$0x1]
    %v313 = vlaneseq
    %v314 = vshrl.u32 %v313, 7
    %v315 = vsub.s32 0, %v314
    %v316 = vrot.slane %v311, %v315
    %v318 = vadd.f32 %v309, %v316
    %v319 = vadd.f32 %v310, %v316
    %320 = vst [vmem:[#allocation10] sm:$0xff] %v318
    %321 = vst [vmem:[#allocation10 + $0x8] sm:$0xff] %v319
    %322 = vmatprep.subr.bf16.mxu0 0
    %323 = vmatpush1.bf16.msra.mxu0 %v157
    %324 = vmatprep.subr.bf16.mxu0 0
    %325 = vmatpush1.bf16.msra.mxu0 %v158
    %326 = vmatprep.subr.bf16.mxu0 0
    %327 = vmatpush1.bf16.msra.mxu0 %v159
    %328 = vmatprep.subr.bf16.mxu0 0
    %329 = vmatpush1.bf16.msra.mxu0 %v160
    %330 = vmatprep.subr.bf16.mxu0 0
    %331 = vmatpush1.bf16.msra.mxu0 %v161
    %332 = vmatprep.subr.bf16.mxu0 0
    %333 = vmatpush1.bf16.msra.mxu0 %v162
    %334 = vmatprep.subr.bf16.mxu0 0
    %335 = vmatpush1.bf16.msra.mxu0 %v163
    %336 = vmatprep.subr.bf16.mxu0 0
    %337 = vmatpush1.bf16.msra.mxu0 %v164
    %338 = vmatprep.subr.bf16.mxu0 0
    %339 = vmatpush1.bf16.msra.mxu0 0
    %340 = vmatprep.subr.bf16.mxu0 0
    %341 = vmatpush1.bf16.msra.mxu0 0
    %342 = vmatprep.subr.bf16.mxu0 0
    %343 = vmatpush1.bf16.msra.mxu0 0
    %344 = vmatprep.subr.bf16.mxu0 0
    %345 = vmatpush1.bf16.msra.mxu0 0
    %346 = vmatprep.subr.bf16.mxu0 0
    %347 = vmatpush1.bf16.msra.mxu0 0
    %348 = vmatprep.subr.bf16.mxu0 0
    %349 = vmatpush1.bf16.msra.mxu0 0
    %350 = vmatprep.subr.bf16.mxu0 0
    %351 = vmatpush1.bf16.msra.mxu0 0
    %352 = vmatprep.subr.bf16.mxu0 0
    %353 = vmatpush1.bf16.msra.mxu0 0
    %354 = vmatprep.mubr.bf16.mxu0 0
    %355 = vmatmul.mubr.bf16.gmra.mrb[0].mxu0 %v218
    %v356 = vpop.f32.mrb[0].mxu0
    %v357 = vadd.f32 0.0, %v356
    %v358 = vpop.f32.mrb[0].mxu0
    %v359 = vpop.f32.mrb[0].mxu0
    %v360 = vadd.f32 0.0, %v359
    %v361 = vpop.f32.mrb[0].mxu0
    %362 = vdwg.mxu0
    %363 = vmatprep.subr.bf16.mxu0 0
    %364 = vmatpush1.bf16.msra.mxu0 %v252
    %365 = vmatprep.subr.bf16.mxu0 0
    %366 = vmatpush1.bf16.msra.mxu0 %v253
    %367 = vmatprep.subr.bf16.mxu0 0
    %368 = vmatpush1.bf16.msra.mxu0 %v254
    %369 = vmatprep.subr.bf16.mxu0 0
    %370 = vmatpush1.bf16.msra.mxu0 %v255
    %371 = vmatprep.subr.bf16.mxu0 0
    %372 = vmatpush1.bf16.msra.mxu0 %v256
    %373 = vmatprep.subr.bf16.mxu0 0
    %374 = vmatpush1.bf16.msra.mxu0 %v257
    %375 = vmatprep.subr.bf16.mxu0 0
    %376 = vmatpush1.bf16.msra.mxu0 %v258
    %377 = vmatprep.subr.bf16.mxu0 0
    %378 = vmatpush1.bf16.msra.mxu0 %v259
    %379 = vmatprep.subr.bf16.mxu0 0
    %380 = vmatpush1.bf16.msra.mxu0 0
    %381 = vmatprep.subr.bf16.mxu0 0
    %382 = vmatpush1.bf16.msra.mxu0 0
    %383 = vmatprep.subr.bf16.mxu0 0
    %384 = vmatpush1.bf16.msra.mxu0 0
    %385 = vmatprep.subr.bf16.mxu0 0
    %386 = vmatpush1.bf16.msra.mxu0 0
    %387 = vmatprep.subr.bf16.mxu0 0
    %388 = vmatpush1.bf16.msra.mxu0 0
    %389 = vmatprep.subr.bf16.mxu0 0
    %390 = vmatpush1.bf16.msra.mxu0 0
    %391 = vmatprep.subr.bf16.mxu0 0
    %392 = vmatpush1.bf16.msra.mxu0 0
    %393 = vmatprep.subr.bf16.mxu0 0
    %394 = vmatpush1.bf16.msra.mxu0 0
    %395 = vmatprep.mubr.bf16.mxu0 0
    %396 = vmatmul.mubr.bf16.gmra.mrb[0].mxu0 %v123
    %v397 = vpop.f32.mrb[0].mxu0
    %v398 = vadd.f32 %v357, %v397
    %v399 = vpop.f32.mrb[0].mxu0
    %v400 = vpop.f32.mrb[0].mxu0
    %v401 = vadd.f32 %v360, %v400
    %v402 = vpop.f32.mrb[0].mxu0
    %403 = vdwg.mxu0
    %v404 = vld [vmem:[%s5] sm:$0x1]
    %v406 = vlaneseq
    %v407 = vshrl.u32 %v406, 7
    %v408 = vsub.s32 0, %v407
    %v409 = vrot.slane %v404, %v408
    %v411 = vadd.f32 %v398, %v409
    %v412 = vadd.f32 %v401, %v409
    %413 = vst [vmem:[#allocation11] sm:$0xff] %v411
    %414 = vst [vmem:[#allocation11 + $0x8] sm:$0xff] %v412
    // Predicated region
    $region42: #{tpu_custom_call.1} parent=1 // pred_check
      _
    $region43: #{tpu_custom_call.1} parent=1 // pred_check_branch
      %416 = sbr.rel (0) target = $region45
    $region44: #{tpu_custom_call.1} parent=1 // pred_region
      %s418 = ssub.s32 256, 256
      %419 = vsyncadd [#allocation4], %s418
      %s420 = sshll.u32 [#allocation10], 4
      %s421 = int_to_ptr.vmem [resolvable:$true] %s420
      %426 = dma.vmem_to_hbm [thread:$0]  %s421, 256, %s6, [#allocation4], 128, 128, 8
    $region45: #{tpu_custom_call.1} parent=1 // pred_fallthru
      _
    // Predicated region
    $region46: #{tpu_custom_call.1} parent=1 // pred_check
      _
    $region47: #{tpu_custom_call.1} parent=1 // pred_check_branch
      %428 = sbr.rel (0) target = $region49
    $region48: #{tpu_custom_call.1} parent=1 // pred_region
      %s430 = ssub.s32 256, 256
      %431 = vsyncadd [#allocation12], %s430
      %s432 = sshll.u32 [#allocation11], 4
      %s433 = int_to_ptr.vmem [resolvable:$true] %s432
      %438 = dma.vmem_to_hbm [thread:$0]  %s433, 256, %s7, [#allocation12], 128, 128, 8
    $region49: #{tpu_custom_call.1} parent=1 // pred_fallthru
      _
    // Predicated region
    $region50: #{tpu_custom_call.1} parent=1 // pred_check
      _
    $region51: #{tpu_custom_call.1} parent=1 // pred_check_branch
      %440 = sbr.rel (0) target = $region53
    $region52: #{tpu_custom_call.1} parent=1 // pred_region
      %441 = dma.done [#allocation4], 256
    $region53: #{tpu_custom_call.1} parent=1 // pred_fallthru
      _
    // Predicated region
    $region54: #{tpu_custom_call.1} parent=1 // pred_check
      _
    $region55: #{tpu_custom_call.1} parent=1 // pred_check_branch
      %443 = sbr.rel (0) target = $region57
    $region56: #{tpu_custom_call.1} parent=1 // pred_region
      %444 = dma.done [#allocation12], 256
    $region57: #{tpu_custom_call.1} parent=1 // pred_fallthru
      _
    %445 = vsyncpa [#allocation3], 1
    %446 = vsyncpa [#allocation6], 1
    %447 = vsyncpa [#allocation9], 1
    %448 = vsyncpa [#allocation4], 1
    %449 = vsyncpa [#allocation12], 1

</llo_original>
